<compile_context>
chip_gen: v6e
topology: v6e:2x2x1
jax: 0.10.0
libtpu: 0.0.40
codegen_flags: <defaults>
</compile_context>

<pallas_src>
import functools

import numpy as np
import jax
import jax.numpy as jnp
from jax.experimental import pallas as pl
from jax.experimental.pallas import tpu as pltpu


# ------------------------------ Pallas kernels ------------------------------

def _tap(c, v):
    """Weighted tap; skips the multiply for unit weights."""
    return v if c == 1.0 else c * v


def _load_padded(x_ref, xpad_ref):
    """Fused zero-padding: copy the (tn, h, w) input block (original dtype)
    into the interior of the zero-filled (tn, hp, wp) f32 VMEM scratch."""
    tn, h, w = x_ref.shape
    _, hp, wp = xpad_ref.shape
    p = (hp - h) // 2
    if p:
        # Only the K-1 halo strictly needs zeroing, but a full VMEM memset is
        # cheap next to the HBM DMA this kernel is bound by, and it stays
        # correct when the grid is sharded across TensorCores (no reliance on
        # program_id == 0 executing on every core).
        xpad_ref[...] = jnp.zeros_like(xpad_ref)
        xpad_ref[:, p:p + h, p:p + w] = x_ref[...].astype(jnp.float32)
    else:
        xpad_ref[...] = x_ref[...].astype(jnp.float32)


def _blur_separable_kernel(x_ref, o_ref, xpad_ref, *, taps, scale):
    """Separable KxK blur of one NCHW plane tile.

    x_ref:    (tn, h, w)    input block, original dtype.
    o_ref:    (tn, ho, wo)  output block, original dtype (full-resolution blur).
    xpad_ref: (tn, hp, wp)  f32 scratch holding the zero-padded tile.
    """
    _load_padded(x_ref, xpad_ref)
    _, ho, wo = o_ref.shape
    k = len(taps)
    # H pass first (sublane-offset windows of the padded scratch) so the
    # lane-offset slices of the W pass run on the smaller intermediate.
    acc = _tap(taps[0], xpad_ref[:, 0:ho, :])
    for t in range(1, k):
        acc = acc + _tap(taps[t], xpad_ref[:, t:t + ho, :])
    # W pass (lane-offset windows of the intermediate).
    out = _tap(taps[0], acc[:, :, 0:wo])
    for t in range(1, k):
        out = out + _tap(taps[t], acc[:, :, t:t + wo])
    if scale != 1.0:
        out = out * scale          # normalization factored out of the taps
    o_ref[...] = out.astype(o_ref.dtype)


def _blur_full_kernel(x_ref, o_ref, xpad_ref, *, k2d, scale):
    """General (non-separable) Kh x Kw blur of one NCHW plane tile."""
    _load_padded(x_ref, xpad_ref)
    tn = x_ref.shape[0]
    _, ho, wo = o_ref.shape
    out = None
    for dy, krow in enumerate(k2d):
        row = None
        for dx, kval in enumerate(krow):
            if kval == 0.0:
                continue
            if row is None:
                row = xpad_ref[:, dy:dy + ho, :]          # (tn, ho, wp)
            term = _tap(kval, row[:, :, dx:dx + wo])      # (tn, ho, wo)
            out = term if out is None else out + term
    if out is None:
        out = jnp.zeros((tn, ho, wo), jnp.float32)
    if scale != 1.0:
        out = out * scale
    o_ref[...] = out.astype(o_ref.dtype)


# ------------------------------ host-side glue -------------------------------

def _prepare_kernel(kernel, normalize, flip):
    """Mirrors Blur2d.__init__ preprocessing; returns raw taps plus a factored
    normalization scale (applied exactly once inside the kernel)."""
    k = np.asarray(kernel, dtype=np.float64)
    if k.ndim == 1:
        k1 = k.copy()
        k2 = np.outer(k, k)
    else:
        assert k.ndim == 2
        k1, k2 = None, k.copy()
    scale = (1.0 / k2.sum()) if normalize else 1.0
    if flip:
        k2 = k2[::-1, ::-1]
        if k1 is not None:
            k1 = k1[::-1]
    k2_eff = k2 * scale                               # the module's buffer
    no_conv = (k2_eff.size == 1 and float(k2_eff.reshape(-1)[0]) == 1.0)
    return k1, k2, scale, k2_eff, no_conv


def _vmem_capacity_bytes():
    """Per-core VMEM capacity; conservative 64 MiB (v7x) fallback."""
    try:
        cap = int(getattr(pltpu.get_tpu_info(), "vmem_capacity_bytes", 0))
        if cap > 0:
            return cap
    except Exception:
        pass
    return 64 * 1024 * 1024


def _pick_plane_tile(n, per_plane_bytes, budget_bytes):
    """Largest plane tile tn such that tn | n, the per-block VMEM estimate fits
    the budget, and the grid keeps >=2 (preferably an even number of) steps so
    v7x's two TensorCores both get work."""
    tn_max = max(int(budget_bytes // max(per_plane_bytes, 1)), 1)
    tn_max = min(tn_max, n)
    fits = [d for d in range(1, tn_max + 1) if n % d == 0]     # always has 1
    even_steps = [d for d in fits if (n // d) % 2 == 0]
    multi_steps = [d for d in fits if (n // d) >= 2]
    for cand in (even_steps, multi_steps, fits):
        if cand:
            return max(cand)
    return 1


def make_blur2d(kernel=(1.0, 2.0, 1.0), padding=1, normalize=True, flip=False,
                stride=1):
    """Returns (forward_fn, effective_2d_kernel).  forward_fn matches
    Blur2d(kernel, padding, normalize, flip, stride).forward on NCHW input."""
    k1, k2_raw, scale, k2_eff, no_conv = _prepare_kernel(kernel, normalize, flip)
    kh, kw = k2_raw.shape

    def forward(x_nchw):
        if no_conv:
            return x_nchw if stride == 1 else x_nchw[:, :, ::stride, ::stride]

        b, c, h, w = x_nchw.shape
        n = b * c
        p = padding
        hp, wp = h + 2 * p, w + 2 * p
        ho_f, wo_f = hp - kh + 1, wp - kw + 1           # full-resolution blur
        ho = (ho_f - 1) // stride + 1
        wo = (wo_f - 1) // stride + 1
        dtype = x_nchw.dtype
        itemsize = jnp.dtype(dtype).itemsize

        # (B, C, H, W) -> (B*C, H, W): a pure reshape, no HBM traffic.
        x3 = x_nchw.reshape(n, h, w)

        # Per-plane VMEM estimate: double-buffered in/out blocks (orig dtype),
        # the padded f32 scratch, the H-pass intermediate and the f32 output
        # value (the previously-missing `acc` term).
        per_plane = (2 * h * w * itemsize + 2 * ho_f * wo_f * itemsize
                     + hp * wp * 4 + (ho_f * wp + ho_f * wo_f) * 4)
        vmem_cap = _vmem_capacity_bytes()
        vmem_limit = min(int(vmem_cap * 0.85), 100 << 20)   # always < physical
        # ~32 MiB blocks already sit on the HBM-roofline plateau; leave the
        # rest of VMEM as compiler headroom.
        block_budget = min(max(vmem_limit - (8 << 20), 4 << 20), 32 << 20)
        tn = _pick_plane_tile(n, per_plane, block_budget)
        # TODO(synk): if per_plane alone exceeds the budget (~>1.5k^2 f32 maps)
        # H-halo spatial tiling is needed; StyleGAN tops out at 1024^2.

        if k1 is not None:     # separable 1-D kernel (the StyleGAN case)
            body = functools.partial(
                _blur_separable_kernel,
                taps=tuple(float(v) for v in k1), scale=float(scale))
        else:                  # genuine 2-D kernel
            body = functools.partial(
                _blur_full_kernel,
                k2d=tuple(tuple(float(v) for v in row) for row in k2_raw),
                scale=float(scale))

        out = pl.pallas_call(
            body,
            out_shape=jax.ShapeDtypeStruct((n, ho_f, wo_f), dtype),
            grid=(n // tn,),
            in_specs=[pl.BlockSpec((tn, h, w), lambda i: (i, 0, 0))],
            out_specs=pl.BlockSpec((tn, ho_f, wo_f), lambda i: (i, 0, 0)),
            scratch_shapes=[pltpu.VMEM((tn, hp, wp), jnp.float32)],
            compiler_params=pltpu.CompilerParams(
                dimension_semantics=("parallel",),
                vmem_limit_bytes=int(vmem_limit)),
        )(x3)

        if stride > 1:
            # TODO(synk): fuse the stride into the kernel's tap slices (needs
            # strided lane reads in NCHW layout); cold for StyleGAN (stride=1).
            out = out[:, ::stride, ::stride]
        return out.reshape(b, c, ho, wo)

    return forward, k2_eff.astype(np.float32)


# ------------------------------ reference (XLA) ------------------------------

def _reference_blur2d(x_nchw, k2, padding, stride):
    """Depthwise cross-correlation reference matching F.conv2d semantics."""
    b, c, h, w = x_nchw.shape
    lhs = x_nchw.reshape(b * c, 1, h, w).astype(jnp.float32)
    rhs = jnp.asarray(k2, jnp.float32)[None, None, :, :]
    y = jax.lax.conv_general_dilated(
        lhs, rhs, window_strides=(stride, stride),
        padding=[(padding, padding), (padding, padding)],
        dimension_numbers=("NCHW", "OIHW", "NCHW"))
    return y.reshape(b, c, y.shape[2], y.shape[3])


if __name__ == "__main__":
    key = jax.random.PRNGKey(0)
    x = jax.random.normal(key, (2, 4, 16, 16), jnp.float32)   # NCHW input

    # 1) Default StyleGAN blur: kernel=[1,2,1], padding=1, normalize=True.
    blur, k2a = make_blur2d((1.0, 2.0, 1.0), padding=1, normalize=True,
                            flip=False, stride=1)
    y1 = jax.block_until_ready(jax.jit(blur)(x))
    assert y1.shape == (2, 4, 16, 16), y1.shape
    np.testing.assert_allclose(np.asarray(y1),
                               np.asarray(_reference_blur2d(x, k2a, 1, 1)),
                               rtol=1e-5, atol=1e-5)

    # 2) Non-separable 2-D kernel path.
    blur2, k2b = make_blur2d(np.array([[1.0, 2.0], [3.0, 4.0]]), padding=1,
                             normalize=True, flip=False, stride=1)
    y2 = jax.block_until_ready(jax.jit(blur2)(x))
    assert y2.shape == (2, 4, 17, 17), y2.shape
    np.testing.assert_allclose(np.asarray(y2),
                               np.asarray(_reference_blur2d(x, k2b, 1, 1)),
                               rtol=1e-5, atol=1e-5)

    # 3) Strided "pool-like" blur: kernel=[.5,.5], no normalize, pad=0, stride=2.
    blur3, k2c = make_blur2d((0.5, 0.5), padding=0, normalize=False,
                             flip=False, stride=2)
    y3 = jax.block_until_ready(jax.jit(blur3)(x))
    assert y3.shape == (2, 4, 8, 8), y3.shape
    np.testing.assert_allclose(np.asarray(y3),
                               np.asarray(_reference_blur2d(x, k2c, 0, 2)),
                               rtol=1e-5, atol=1e-5)

    # 4) bf16 stays bf16 through HBM (f32 accumulation inside the kernel).
    xb = x.astype(jnp.bfloat16)
    y4 = jax.block_until_ready(jax.jit(blur)(xb))
    assert y4.dtype == jnp.bfloat16 and y4.shape == (2, 4, 16, 16)
    np.testing.assert_allclose(
        np.asarray(y4, dtype=np.float32),
        np.asarray(_reference_blur2d(xb.astype(jnp.float32), k2a, 1, 1)),
        rtol=2e-2, atol=2e-2)

    print("KERNEL_OK")
</pallas_src>

<mosaic_0001>
module attributes {stable_mosaic.version = 11 : i64} {
  func.func @_blur_separable_kernel(%arg0: i32, %arg1: memref<4x16x16xf32, #tpu.memory_space<vmem>>, %arg2: memref<4x16x16xf32, #tpu.memory_space<vmem>>, %arg3: memref<4x18x18xf32, #tpu.memory_space<vmem>>) attributes {dimension_semantics = [#tpu.dimension_semantics<parallel>], iteration_bounds = array<i64: 2>, scalar_prefetch = 0 : i64, scratch_operands = 1 : i64, tpu.core_type = #tpu.core_type<tc>, window_params = [{transform_indices = @transform_0, window_bounds = array<i64: 4, 16, 16>}, {transform_indices = @transform_1, window_bounds = array<i64: 4, 16, 16>}]} {
    %cst = arith.constant 0.000000e+00 : f32
    %0 = vector.broadcast %cst : f32 to vector<4x18x18xf32>
    %c0 = arith.constant 0 : index
    %c0_0 = arith.constant 0 : index
    %c0_1 = arith.constant 0 : index
    %1 = vector.load %arg3[%c0, %c0_0, %c0_1] : memref<4x18x18xf32, #tpu.memory_space<vmem>>, vector<4x18x18xf32>
    tpu.vector_store %arg3[%c0, %c0_0, %c0_1], %0 {strides = array<i32>} : memref<4x18x18xf32, #tpu.memory_space<vmem>>, vector<4x18x18xf32>,
    %c0_2 = arith.constant 0 : index
    %c0_3 = arith.constant 0 : index
    %c0_4 = arith.constant 0 : index
    %2 = vector.load %arg1[%c0_2, %c0_3, %c0_4] : memref<4x16x16xf32, #tpu.memory_space<vmem>>, vector<4x16x16xf32>
    %c0_5 = arith.constant 0 : index
    %c1 = arith.constant 1 : index
    %c1_6 = arith.constant 1 : index
    %3 = vector.load %arg3[%c0_5, %c1, %c1_6] : memref<4x18x18xf32, #tpu.memory_space<vmem>>, vector<4x16x16xf32>
    tpu.vector_store %arg3[%c0_5, %c1, %c1_6], %2 {strides = array<i32>} : memref<4x18x18xf32, #tpu.memory_space<vmem>>, vector<4x16x16xf32>,
    %c0_7 = arith.constant 0 : index
    %c0_8 = arith.constant 0 : index
    %c0_9 = arith.constant 0 : index
    %4 = vector.load %arg3[%c0_7, %c0_8, %c0_9] : memref<4x18x18xf32, #tpu.memory_space<vmem>>, vector<4x16x18xf32>
    %c0_10 = arith.constant 0 : index
    %c1_11 = arith.constant 1 : index
    %c0_12 = arith.constant 0 : index
    %5 = vector.load %arg3[%c0_10, %c1_11, %c0_12] : memref<4x18x18xf32, #tpu.memory_space<vmem>>, vector<4x16x18xf32>
    %cst_13 = arith.constant 2.000000e+00 : f32
    %6 = vector.broadcast %cst_13 : f32 to vector<4x16x18xf32>
    %7 = arith.mulf %6, %5 : vector<4x16x18xf32>
    %8 = arith.addf %4, %7 : vector<4x16x18xf32>
    %c0_14 = arith.constant 0 : index
    %c2 = arith.constant 2 : index
    %c0_15 = arith.constant 0 : index
    %9 = vector.load %arg3[%c0_14, %c2, %c0_15] : memref<4x18x18xf32, #tpu.memory_space<vmem>>, vector<4x16x18xf32>
    %10 = arith.addf %8, %9 : vector<4x16x18xf32>
    %11 = vector.extract_strided_slice %10 {offsets = [0, 0, 0], sizes = [4, 16, 16], strides = [1, 1, 1]} : vector<4x16x18xf32> to vector<4x16x16xf32>
    %12 = vector.extract_strided_slice %10 {offsets = [0, 0, 1], sizes = [4, 16, 16], strides = [1, 1, 1]} : vector<4x16x18xf32> to vector<4x16x16xf32>
    %cst_16 = arith.constant 2.000000e+00 : f32
    %13 = vector.broadcast %cst_16 : f32 to vector<4x16x16xf32>
    %14 = arith.mulf %13, %12 : vector<4x16x16xf32>
    %15 = arith.addf %11, %14 : vector<4x16x16xf32>
    %16 = vector.extract_strided_slice %10 {offsets = [0, 0, 2], sizes = [4, 16, 16], strides = [1, 1, 1]} : vector<4x16x18xf32> to vector<4x16x16xf32>
    %17 = arith.addf %15, %16 : vector<4x16x16xf32>
    %cst_17 = arith.constant 6.250000e-02 : f32
    %18 = vector.broadcast %cst_17 : f32 to vector<4x16x16xf32>
    %19 = arith.mulf %17, %18 : vector<4x16x16xf32>
    %c0_18 = arith.constant 0 : index
    %c0_19 = arith.constant 0 : index
    %c0_20 = arith.constant 0 : index
    %20 = vector.load %arg2[%c0_18, %c0_19, %c0_20] : memref<4x16x16xf32, #tpu.memory_space<vmem>>, vector<4x16x16xf32>
    tpu.vector_store %arg2[%c0_18, %c0_19, %c0_20], %19 {strides = array<i32>} : memref<4x16x16xf32, #tpu.memory_space<vmem>>, vector<4x16x16xf32>,
    return
  }
  func.func @transform_0(%arg0: i32) -> (i32, i32, i32) {
    %c0_i32 = arith.constant 0 : i32
    %c0_i32_0 = arith.constant 0 : i32
    %c0_i32_1 = arith.constant 0 : i32
    return %arg0, %c0_i32, %c0_i32_0 : i32, i32, i32
  }
  func.func @transform_1(%arg0: i32) -> (i32, i32, i32) {
    %c0_i32 = arith.constant 0 : i32
    %c0_i32_0 = arith.constant 0 : i32
    %c0_i32_1 = arith.constant 0 : i32
    return %arg0, %c0_i32, %c0_i32_0 : i32, i32, i32
  }
}

</mosaic_0001>

<llo_original>
// kernel: forward.1
$region0: #{forward.1}
  #allocation0 [shape = 'u32[]', space=smem, size = 0x4, offset = 0x4, fixed_abs, tag = 'smem constant byte address 0x4 - core index']
  #allocation1 [shape = 'u32[144,128]{1,0:T(1,128)}', space=vmem, size = 0x12000, scoped, tag = 'internal scratch']
  #allocation2 [shape = 'f32[4,18,18]{2,1,0:T(8,128)}', space=vmem, size = 0xc000, scoped, tag = 'scratch operand']
  %s0 = inlined_call_operand.hbm [shape: f32[8,16,16], index: 0, kind: input, shape index: {}]
  %s1 = inlined_call_operand.hbm [shape: f32[8,16,16], index: 1, kind: output, shape index: {}]
  %s2 = sld [smem:[#allocation0]]
  $region41: #{forward.1} parent=0
    _
  %s4 = ssub.s32 1, %s2
  %s5 = scalar_select 0, %s4, %s2
  $region1: #{forward.1} parent=0
    #allocation3 [shape = 'u8[65536]{0}', space=vmem, size = 0x10000, scoped, tag = 'input window, operand 0']
    #allocation4 [shape = 's32[2]{0}', space=sflag, size = 0x8, scoped, tag = 'scoped memory for forward.1']
    #allocation5 [shape = 's32[2]{0}', space=sflag, size = 0x8, scoped, tag = 'scoped memory for forward.1']
    #allocation6 [shape = 'u8[65536]{0}', space=vmem, size = 0x10000, scoped, tag = 'output window, operand 0']
    %6 = vsyncpa [#allocation4], 0
    %s7 = scalar_lea.sflag [#allocation4], 1
    %8 = vsyncpa %s7, 0
    %9 = vsyncpa [#allocation5], 0
    %s10 = scalar_lea.sflag [#allocation5], 1
    %11 = vsyncpa %s10, 0
    loop: start=0, step=1, limit=4
    $region2: #{forward.1} parent=1 // loop_pre_header
      _
    $region3: #{forward.1} parent=1 // loop_header
      %s13 = sphi 0, %s17
      %p14 = scmp.ge.s32.totalorder %s13, 4
      %s23 = sphi 0, %s25
      %s26 = sphi 0, %s23
      %s27 = sphi 0, %s26
      %s43 = sphi 0, %s27
      %s49 = sphi 0, %s51
      %s52 = sphi 0, %s49
      %s53 = sphi 0, %s52
      %s69 = sphi 0, %s53
    $region4: #{forward.1} parent=1 // loop_header_branch
      %16 = sbr.rel (%p14) target = $region8
    $region5: #{forward.1} parent=1 // loop_body
      %s18 = ssub.s32 %s13, 1
      %s19 = ssub.s32 %s13, 2
      %s20 = sadd.s32 %s13, 1
      %s21 = ssub.s32 %s13, %s20
      %p22 = scmp.eq.s32.totalorder %s21, 0
      %s24 = sadd.s32 %s23, 1
      %s25 = scalar_select %p22, %s23, %s24
      %p28 = pneg %p22
      %p29 = scmp.eq.s32.totalorder %s13, 1
      %p30 = por %p28, %p29
      %p31 = scmp.ne.s32.totalorder %s23, %s26
      %p32 = scmp.eq.s32.totalorder %s13, 0
      %p33 = por %p31, %p32
      %p34 = scmp.ne.s32.totalorder %s23, %s26
      %p35 = scmp.eq.s32.totalorder %s18, 1
      %p36 = por %p34, %p35
      %p37 = scmp.ne.s32.totalorder %s26, %s27
      %p38 = scmp.eq.s32.totalorder %s18, 0
      %p39 = por %p37, %p38
      %p40 = scmp.ne.s32.totalorder %s26, %s27
      %p41 = scmp.eq.s32.totalorder %s19, 1
      %p42 = por %p40, %p41
      %p44 = scmp.ne.s32.totalorder %s27, %s43
      %p45 = scmp.eq.s32.totalorder %s19, 0
      %p46 = por %p44, %p45
      %s47 = ssub.s32 %s13, %s20
      %p48 = scmp.eq.s32.totalorder %s47, 0
      %s50 = sadd.s32 %s49, 1
      %s51 = scalar_select %p48, %s49, %s50
      %p54 = pneg %p48
      %p55 = scmp.eq.s32.totalorder %s13, 1
      %p56 = por %p54, %p55
      %p57 = scmp.ne.s32.totalorder %s49, %s52
      %p58 = scmp.eq.s32.totalorder %s13, 0
      %p59 = por %p57, %p58
      %p60 = scmp.ne.s32.totalorder %s49, %s52
      %p61 = scmp.eq.s32.totalorder %s18, 1
      %p62 = por %p60, %p61
      %p63 = scmp.ne.s32.totalorder %s52, %s53
      %p64 = scmp.eq.s32.totalorder %s18, 0
      %p65 = por %p63, %p64
      %p66 = scmp.ne.s32.totalorder %s52, %s53
      %p67 = scmp.eq.s32.totalorder %s19, 1
      %p68 = por %p66, %p67
      %p70 = scmp.ne.s32.totalorder %s53, %s69
      %p71 = scmp.eq.s32.totalorder %s19, 0
      %p72 = por %p70, %p71
      %p73 = scmp.le.s32.totalorder 1, %s13
      %p74 = scmp.lt.s32.totalorder %s13, 3
      %p75 = pnand %p73, %p74
      %p76 = pneg %p75
      // Predicated region
      $region9: #{forward.1} parent=5 // pred_check
        _
      $region10: #{forward.1} parent=5 // pred_check_branch
        %78 = sbr.rel (%p75) target = $region12
      $region11: #{forward.1} parent=5 // pred_region
        %s79 = ssub.s32 %s13, 1
      $region12: #{forward.1} parent=5 // pred_fallthru
        _
      %p80 = scmp.lt.s32.totalorder %s13, 2
      // Predicated region
      $region13: #{forward.1} parent=5 // pred_check
        %p81 = pneg %p80
      $region14: #{forward.1} parent=5 // pred_check_branch
        %83 = sbr.rel (%p81) target = $region16
      $region15: #{forward.1} parent=5 // pred_region
        // Predicated region
        $region17: #{forward.1} parent=15 // pred_check
          %p84 = pneg %p33
        $region18: #{forward.1} parent=15 // pred_check_branch
          %86 = sbr.rel (%p84) target = $region20
        $region19: #{forward.1} parent=15 // pred_region
          %s87 = sand.u32 %s23, 1
          %s88 = scalar_lea.sflag [#allocation4], %s87
          %s89 = sand.u32 %s23, 1
          %s90 = smul.addr %s89, 64
          %s91 = scalar_lea.vmem [#allocation3], %s90
          %s92 = smul.u32 4, %s13
          %s94 = ssub.s32 1024, 1024
          %95 = vsyncadd %s88, %s94
          %s96 = smul.addr %s92, 2
          %s97 = smul.addr %s96, 128
          %s98 = scalar_lea.hbm %s0, %s97
          %s99 = sshll.u32 %s91, 4
          %s100 = int_to_ptr.vmem [resolvable:$true] %s99
          %105 = dma.hbm_to_vmem [thread:$0]  %s98, 1024, %s100, %s88, 128, 128, 8
        $region20: #{forward.1} parent=15 // pred_fallthru
          _
      $region16: #{forward.1} parent=5 // pred_fallthru
        _
      %p106 = scmp.le.s32.totalorder 1, %s13
      %p107 = scmp.lt.s32.totalorder %s13, 3
      %p108 = pnand %p106, %p107
      %p109 = pneg %p108
      // Predicated region
      $region21: #{forward.1} parent=5 // pred_check
        _
      $region22: #{forward.1} parent=5 // pred_check_branch
        %111 = sbr.rel (%p108) target = $region24
      $region23: #{forward.1} parent=5 // pred_region
        %s112 = ssub.s32 %s13, 1
        %s113 = sand.u32 %s26, 1
        %s114 = scalar_lea.sflag [#allocation4], %s113
        %s115 = sand.u32 %s26, 1
        %s116 = smul.addr %s115, 64
        %s117 = scalar_lea.vmem [#allocation3], %s116
        // Predicated region
        $region25: #{forward.1} parent=23 // pred_check
          %p118 = pneg %p39
        $region26: #{forward.1} parent=23 // pred_check_branch
          %120 = sbr.rel (%p118) target = $region28
        $region27: #{forward.1} parent=23 // pred_region
          %121 = dma.done %s114, 1024
        $region28: #{forward.1} parent=23 // pred_fallthru
          _
        %s122 = sand.u32 %s26, 1
        %s123 = scalar_lea.sflag [#allocation4], %s122
        %s124 = sand.u32 %s26, 1
        %s125 = smul.addr %s124, 64
        %s126 = scalar_lea.vmem [#allocation3], %s125
        %p127 = pneg %p39
        %p128 = pneg %p36
        %p129 = pneg %p65
        %p130 = pneg %p62
        %s131 = sand.u32 %s52, 1
        %s132 = scalar_lea.sflag [#allocation5], %s131
        %s133 = sand.u32 %s52, 1
        %s134 = smul.addr %s133, 64
        %s135 = scalar_lea.vmem [#allocation6], %s134
        %s136 = smul.u32 4, %s18
        %s137 = smul.u32 4, %s18
        %vm138 = vcmask 146432
        %139 = vst.msk [vmem:[#allocation2] sm:$0xff] %vm138, 0.0
        %140 = vst.msk [vmem:[#allocation2 + $0x8] sm:$0xff] %vm138, 0.0
        %vm141 = vcmask 140288
        %142 = vst.msk [vmem:[#allocation2 + $0x10] sm:$0x3] %vm141, 0.0
        %143 = vst.msk [vmem:[#allocation2 + $0x18] sm:$0xff] %vm138, 0.0
        %144 = vst.msk [vmem:[#allocation2 + $0x20] sm:$0xff] %vm138, 0.0
        %145 = vst.msk [vmem:[#allocation2 + $0x28] sm:$0x3] %vm141, 0.0
        %146 = vst.msk [vmem:[#allocation2 + $0x30] sm:$0xff] %vm138, 0.0
        %147 = vst.msk [vmem:[#allocation2 + $0x38] sm:$0xff] %vm138, 0.0
        %148 = vst.msk [vmem:[#allocation2 + $0x40] sm:$0x3] %vm141, 0.0
        %149 = vst.msk [vmem:[#allocation2 + $0x48] sm:$0xff] %vm138, 0.0
        %150 = vst.msk [vmem:[#allocation2 + $0x50] sm:$0xff] %vm138, 0.0
        %151 = vst.msk [vmem:[#allocation2 + $0x58] sm:$0x3] %vm141, 0.0
        %v152 = vld [vmem:[%s117] sm:$0xff]
        %v153 = vld [vmem:[%s117 + $0x8] sm:$0xff]
        %v154 = vld [vmem:[%s117 + $0x10] sm:$0xff]
        %v155 = vld [vmem:[%s117 + $0x18] sm:$0xff]
        %v156 = vld [vmem:[%s117 + $0x20] sm:$0xff]
        %v157 = vld [vmem:[%s117 + $0x28] sm:$0xff]
        %v158 = vld [vmem:[%s117 + $0x30] sm:$0xff]
        %v159 = vld [vmem:[%s117 + $0x38] sm:$0xff]
        %168 = vrot.lane.b32.xlu0 %v152, 1
        %v169 = vpop.permute.xlu0 %168
        %170 = vrot.lane.b32.xlu0 %v153, 1
        %v171 = vpop.permute.xlu0 %170
        %172 = vrot.lane.b32.xlu0 %v154, 1
        %v173 = vpop.permute.xlu0 %172
        %174 = vrot.lane.b32.xlu0 %v155, 1
        %v175 = vpop.permute.xlu0 %174
        %176 = vrot.lane.b32.xlu0 %v156, 1
        %v177 = vpop.permute.xlu0 %176
        %178 = vrot.lane.b32.xlu0 %v157, 1
        %v179 = vpop.permute.xlu0 %178
        %180 = vrot.lane.b32.xlu0 %v158, 1
        %v181 = vpop.permute.xlu0 %180
        %182 = vrot.lane.b32.xlu0 %v159, 1
        %v183 = vpop.permute.xlu0 %182
        %vm192 = vcmask 138248
        %193 = vst.msk [vmem:[#allocation2 + $0x1] sm:$0xff] %vm192, %v169
        %194 = vst.msk [vmem:[#allocation2 + $0x9] sm:$0xff] %vm192, %v171
        %195 = vst.msk [vmem:[#allocation2 + $0x19] sm:$0xff] %vm192, %v173
        %196 = vst.msk [vmem:[#allocation2 + $0x21] sm:$0xff] %vm192, %v175
        %197 = vst.msk [vmem:[#allocation2 + $0x31] sm:$0xff] %vm192, %v177
        %198 = vst.msk [vmem:[#allocation2 + $0x39] sm:$0xff] %vm192, %v179
        %199 = vst.msk [vmem:[#allocation2 + $0x49] sm:$0xff] %vm192, %v181
        %200 = vst.msk [vmem:[#allocation2 + $0x51] sm:$0xff] %vm192, %v183
        %v201 = vld [vmem:[#allocation2] sm:$0xff]
        %v202 = vld [vmem:[#allocation2 + $0x8] sm:$0xff]
        %v203 = vld [vmem:[#allocation2 + $0x18] sm:$0xff]
        %v204 = vld [vmem:[#allocation2 + $0x20] sm:$0xff]
        %v205 = vld [vmem:[#allocation2 + $0x30] sm:$0xff]
        %v206 = vld [vmem:[#allocation2 + $0x38] sm:$0xff]
        %v207 = vld [vmem:[#allocation2 + $0x48] sm:$0xff]
        %v208 = vld [vmem:[#allocation2 + $0x50] sm:$0xff]
        %v209 = vld [vmem:[#allocation2 + $0x1] sm:$0xff]
        %v210 = vld [vmem:[#allocation2 + $0x9] sm:$0xff]
        %v211 = vld [vmem:[#allocation2 + $0x19] sm:$0xff]
        %v212 = vld [vmem:[#allocation2 + $0x21] sm:$0xff]
        %v213 = vld [vmem:[#allocation2 + $0x31] sm:$0xff]
        %v214 = vld [vmem:[#allocation2 + $0x39] sm:$0xff]
        %v215 = vld [vmem:[#allocation2 + $0x49] sm:$0xff]
        %v216 = vld [vmem:[#allocation2 + $0x51] sm:$0xff]
        %v217 = vmul.f32 %v209, 2.0
        %v218 = vmul.f32 %v210, 2.0
        %v219 = vmul.f32 %v211, 2.0
        %v220 = vmul.f32 %v212, 2.0
        %v221 = vmul.f32 %v213, 2.0
        %v222 = vmul.f32 %v214, 2.0
        %v223 = vmul.f32 %v215, 2.0
        %v224 = vmul.f32 %v216, 2.0
        %v225 = vadd.f32 %v201, %v217
        %v226 = vadd.f32 %v202, %v218
        %v227 = vadd.f32 %v203, %v219
        %v228 = vadd.f32 %v204, %v220
        %v229 = vadd.f32 %v205, %v221
        %v230 = vadd.f32 %v206, %v222
        %v231 = vadd.f32 %v207, %v223
        %v232 = vadd.f32 %v208, %v224
        %v233 = vld [vmem:[#allocation2 + $0x2] sm:$0xff]
        %v234 = vld [vmem:[#allocation2 + $0xa] sm:$0xff]
        %v235 = vld [vmem:[#allocation2 + $0x1a] sm:$0xff]
        %v236 = vld [vmem:[#allocation2 + $0x22] sm:$0xff]
        %v237 = vld [vmem:[#allocation2 + $0x32] sm:$0xff]
        %v238 = vld [vmem:[#allocation2 + $0x3a] sm:$0xff]
        %v239 = vld [vmem:[#allocation2 + $0x4a] sm:$0xff]
        %v240 = vld [vmem:[#allocation2 + $0x52] sm:$0xff]
        %v241 = vadd.f32 %v225, %v233
        %v242 = vadd.f32 %v226, %v234
        %v243 = vadd.f32 %v227, %v235
        %v244 = vadd.f32 %v228, %v236
        %v245 = vadd.f32 %v229, %v237
        %v246 = vadd.f32 %v230, %v238
        %v247 = vadd.f32 %v231, %v239
        %v248 = vadd.f32 %v232, %v240
        %v249 = vmul.f32 %v241, 2.0
        %v250 = vmul.f32 %v242, 2.0
        %v251 = vmul.f32 %v243, 2.0
        %v252 = vmul.f32 %v244, 2.0
        %v253 = vmul.f32 %v245, 2.0
        %v254 = vmul.f32 %v246, 2.0
        %v255 = vmul.f32 %v247, 2.0
        %v256 = vmul.f32 %v248, 2.0
        %265 = vrot.lane.b32.xlu0 %v249, 127
        %v266 = vpop.permute.xlu0 %265
        %267 = vrot.lane.b32.xlu0 %v250, 127
        %v268 = vpop.permute.xlu0 %267
        %269 = vrot.lane.b32.xlu0 %v251, 127
        %v270 = vpop.permute.xlu0 %269
        %271 = vrot.lane.b32.xlu0 %v252, 127
        %v272 = vpop.permute.xlu0 %271
        %273 = vrot.lane.b32.xlu0 %v253, 127
        %v274 = vpop.permute.xlu0 %273
        %275 = vrot.lane.b32.xlu0 %v254, 127
        %v276 = vpop.permute.xlu0 %275
        %277 = vrot.lane.b32.xlu0 %v255, 127
        %v278 = vpop.permute.xlu0 %277
        %279 = vrot.lane.b32.xlu0 %v256, 127
        %v280 = vpop.permute.xlu0 %279
        %v289 = vadd.f32 %v241, %v266
        %v290 = vadd.f32 %v242, %v268
        %v291 = vadd.f32 %v243, %v270
        %v292 = vadd.f32 %v244, %v272
        %v293 = vadd.f32 %v245, %v274
        %v294 = vadd.f32 %v246, %v276
        %v295 = vadd.f32 %v247, %v278
        %v296 = vadd.f32 %v248, %v280
        %305 = vrot.lane.b32.xlu0 %v241, 126
        %v306 = vpop.permute.xlu0 %305
        %307 = vrot.lane.b32.xlu0 %v242, 126
        %v308 = vpop.permute.xlu0 %307
        %309 = vrot.lane.b32.xlu0 %v243, 126
        %v310 = vpop.permute.xlu0 %309
        %311 = vrot.lane.b32.xlu0 %v244, 126
        %v312 = vpop.permute.xlu0 %311
        %313 = vrot.lane.b32.xlu0 %v245, 126
        %v314 = vpop.permute.xlu0 %313
        %315 = vrot.lane.b32.xlu0 %v246, 126
        %v316 = vpop.permute.xlu0 %315
        %317 = vrot.lane.b32.xlu0 %v247, 126
        %v318 = vpop.permute.xlu0 %317
        %319 = vrot.lane.b32.xlu0 %v248, 126
        %v320 = vpop.permute.xlu0 %319
        %v329 = vadd.f32 %v289, %v306
        %v330 = vadd.f32 %v290, %v308
        %v331 = vadd.f32 %v291, %v310
        %v332 = vadd.f32 %v292, %v312
        %v333 = vadd.f32 %v293, %v314
        %v334 = vadd.f32 %v294, %v316
        %v335 = vadd.f32 %v295, %v318
        %v336 = vadd.f32 %v296, %v320
        %v337 = vmul.f32 %v329, 0.0625
        %v338 = vmul.f32 %v330, 0.0625
        %v339 = vmul.f32 %v331, 0.0625
        %v340 = vmul.f32 %v332, 0.0625
        %v341 = vmul.f32 %v333, 0.0625
        %v342 = vmul.f32 %v334, 0.0625
        %v343 = vmul.f32 %v335, 0.0625
        %v344 = vmul.f32 %v336, 0.0625
        %vm345 = vcmask 130048
        %346 = vst.msk [vmem:[%s135] sm:$0xff] %vm345, %v337
        %347 = vst.msk [vmem:[%s135 + $0x8] sm:$0xff] %vm345, %v338
        %348 = vst.msk [vmem:[%s135 + $0x10] sm:$0xff] %vm345, %v339
        %349 = vst.msk [vmem:[%s135 + $0x18] sm:$0xff] %vm345, %v340
        %350 = vst.msk [vmem:[%s135 + $0x20] sm:$0xff] %vm345, %v341
        %351 = vst.msk [vmem:[%s135 + $0x28] sm:$0xff] %vm345, %v342
        %352 = vst.msk [vmem:[%s135 + $0x30] sm:$0xff] %vm345, %v343
        %353 = vst.msk [vmem:[%s135 + $0x38] sm:$0xff] %vm345, %v344
        %s354 = sand.u32 %s52, 1
        %s355 = scalar_lea.sflag [#allocation5], %s354
        %s356 = sand.u32 %s52, 1
        %s357 = smul.addr %s356, 64
        %s358 = scalar_lea.vmem [#allocation6], %s357
        // Predicated region
        $region29: #{forward.1} parent=23 // pred_check
          %p359 = pneg %p62
        $region30: #{forward.1} parent=23 // pred_check_branch
          %361 = sbr.rel (%p359) target = $region32
        $region31: #{forward.1} parent=23 // pred_region
          %s362 = smul.u32 4, %s18
          %s364 = ssub.s32 1024, 1024
          %365 = vsyncadd %s355, %s364
          %s366 = smul.addr %s362, 2
          %s367 = smul.addr %s366, 128
          %s368 = scalar_lea.hbm %s1, %s367
          %s369 = sshll.u32 %s358, 4
          %s370 = int_to_ptr.vmem [resolvable:$true] %s369
          %375 = dma.vmem_to_hbm [thread:$0]  %s370, 1024, %s368, %s355, 128, 128, 8
        $region32: #{forward.1} parent=23 // pred_fallthru
          _
      $region24: #{forward.1} parent=5 // pred_fallthru
        _
      %p376 = scmp.le.s32.totalorder 2, %s13
      // Predicated region
      $region33: #{forward.1} parent=5 // pred_check
        %p377 = pneg %p376
      $region34: #{forward.1} parent=5 // pred_check_branch
        %379 = sbr.rel (%p377) target = $region36
      $region35: #{forward.1} parent=5 // pred_region
        %s380 = ssub.s32 %s13, 2
        // Predicated region
        $region37: #{forward.1} parent=35 // pred_check
          %p381 = pneg %p68
        $region38: #{forward.1} parent=35 // pred_check_branch
          %383 = sbr.rel (%p381) target = $region40
        $region39: #{forward.1} parent=35 // pred_region
          %s384 = sand.u32 %s53, 1
          %s385 = scalar_lea.sflag [#allocation5], %s384
          %s386 = sand.u32 %s53, 1
          %s387 = smul.addr %s386, 64
          %s388 = scalar_lea.vmem [#allocation6], %s387
          %389 = dma.done %s385, 1024
        $region40: #{forward.1} parent=35 // pred_fallthru
          _
      $region36: #{forward.1} parent=5 // pred_fallthru
        _
    $region6: #{forward.1} parent=1 // loop_footer
      %s17 = sadd.s32 1, %s13
    $region7: #{forward.1} parent=1 // loop_footer_branch
      %12 = sbr.rel target = $region3
    $region8: #{forward.1} parent=1 // loop_exit
      _
    %390 = vsyncpa [#allocation4], 1
    %s391 = scalar_lea.sflag [#allocation4], 1
    %392 = vsyncpa %s391, 1
    %393 = vsyncpa [#allocation5], 1
    %s394 = scalar_lea.sflag [#allocation5], 1
    %395 = vsyncpa %s394, 1

</llo_original>
